<compile_context>
chip_gen: v7x
topology: tpu7x:2x2x1
jax: 0.10.0
libtpu: 0.0.40
codegen_flags: <defaults>
</compile_context>

<pallas_src>
import jax
import jax.numpy as jnp
from jax.experimental import pallas as pl
from jax.experimental.pallas import tpu as pltpu


def _head_kernel(x_ref, w1_ref, b1_ref, w2_ref, b2_ref, o_ref):
    # x_ref:  (bt, D) compute dtype (pooled first-token activations)
    # w1_ref: (D, H) compute dtype    b1_ref: (1, H) f32
    # w2_ref: (H, C) compute dtype    b2_ref: (1, C) f32
    # o_ref:  (bt, C)
    # TODO(synk): dropout is the eval-mode identity here; training-mode dropout
    # would use pltpu.prng_seed + pltpu.stateful_bernoulli.
    h = jnp.dot(x_ref[...], w1_ref[...],
                preferred_element_type=jnp.float32) + b1_ref[...]
    h = jnp.tanh(h)  # f32 elementwise (v5e VPU/EUP have no bf16 path)
    y = jnp.dot(h.astype(w2_ref.dtype), w2_ref[...],
                preferred_element_type=jnp.float32) + b2_ref[...]
    o_ref[...] = y.astype(o_ref.dtype)


def _round_up(x: int, m: int) -> int:
    return ((x + m - 1) // m) * m


def _pick_batch_tile(B: int, max_tile: int) -> int:
    # At most two grid steps: one tile per TensorCore on dual-TC v7x; only 1-2
    # cheap serial steps on single-TC v5e/v6e.  Very large batches fall back to
    # `max_tile` rows per step (still VMEM-safe, still pipelined/core-sharded).
    target_tiles = 2 if B >= 16 else 1
    bt = _round_up(pl.cdiv(B, target_tiles), 8)  # sublane-aligned tile
    bt = min(bt, max_tile)
    return min(bt, B)                            # small B -> full-dim block


def plbart_classification_head(hidden_states, w1, b1, w2, b2, *,
                               batch_tile=None, max_batch_tile=1024,
                               compute_dtype=jnp.bfloat16):
    """hidden_states: (B, S, D); w1: (D, H); b1: (H,); w2: (H, C); b2: (C,)."""
    B, S, D = hidden_states.shape
    H = w1.shape[1]
    C = w2.shape[1]

    # First-token pooling + compute-dtype cast fused into one XLA op in the
    # wrapper: only a compute_dtype (B, D) slab is materialized and DMA'd.
    x = hidden_states[:, 0, :].astype(compute_dtype)

    # bf16 (default) weights halve weight HBM traffic and use the native bf16
    # MXU; biases stay f32 for the f32 accumulate / bias-add / tanh.
    w1c = w1.astype(compute_dtype)
    w2c = w2.astype(compute_dtype)
    b1f = b1.reshape(1, H).astype(jnp.float32)
    b2f = b2.reshape(1, C).astype(jnp.float32)

    if batch_tile is not None:
        bt = min(batch_tile, B)
    else:
        bt = _pick_batch_tile(B, max_batch_tile)
    grid = (pl.cdiv(B, bt),)

    return pl.pallas_call(
        _head_kernel,
        out_shape=jax.ShapeDtypeStruct((B, C), hidden_states.dtype),
        grid_spec=pltpu.PrefetchScalarGridSpec(
            num_scalar_prefetch=0,
            grid=grid,
            in_specs=[
                pl.BlockSpec((bt, D), lambda i: (i, 0)),  # pooled tokens (tiled)
                pl.BlockSpec((D, H), lambda i: (0, 0)),   # w1: resident across grid
                pl.BlockSpec((1, H), lambda i: (0, 0)),   # b1: resident
                pl.BlockSpec((H, C), lambda i: (0, 0)),   # w2: resident
                pl.BlockSpec((1, C), lambda i: (0, 0)),   # b2: resident
            ],
            out_specs=pl.BlockSpec((bt, C), lambda i: (i, 0)),
        ),
        compiler_params=pltpu.CompilerParams(
            # Batch tiles are independent -> DMA/compute pipelining and
            # megacore / v7x dual-TC sharding of the (<=2-step) grid.
            dimension_semantics=("parallel",),
        ),
    )(x, w1c, b1f, w2c, b2f)


def _reference(hidden_states, w1, b1, w2, b2):
    x = hidden_states[:, 0, :]
    h = jnp.tanh(x @ w1 + b1)
    return h @ w2 + b2


if __name__ == "__main__":
    # Small, module-consistent shapes (don't benchmark on these -- per-call
    # overhead dominates; production dims are D=H=768, B in the hundreds).
    B, S = 2, 8
    input_dim, inner_dim, num_classes = 32, 32, 4

    key = jax.random.PRNGKey(0)
    k_x, k_w1, k_b1, k_w2, k_b2 = jax.random.split(key, 5)

    hidden_states = jax.random.normal(k_x, (B, S, input_dim), dtype=jnp.float32)

    # Deterministic synthetic params (PyTorch Linear-style init, stored
    # pre-transposed as (in, out) for the kernel).
    bound1 = 1.0 / (input_dim ** 0.5)
    w1 = jax.random.uniform(k_w1, (input_dim, inner_dim), jnp.float32, -bound1, bound1)
    b1 = jax.random.uniform(k_b1, (inner_dim,), jnp.float32, -bound1, bound1)
    bound2 = 1.0 / (inner_dim ** 0.5)
    w2 = jax.random.uniform(k_w2, (inner_dim, num_classes), jnp.float32, -bound2, bound2)
    b2 = jax.random.uniform(k_b2, (num_classes,), jnp.float32, -bound2, bound2)

    ref = _reference(hidden_states, w1, b1, w2, b2)

    # Default (production) path: bf16 MXU operands, f32 accumulate.
    out_bf16 = plbart_classification_head(hidden_states, w1, b1, w2, b2)
    out_bf16 = jax.block_until_ready(out_bf16)
    assert out_bf16.shape == (B, num_classes)
    assert jnp.allclose(out_bf16, ref, atol=3e-2, rtol=3e-2), "bf16 path mismatch"

    # Full-precision path for a tighter numerical check.
    out_f32 = plbart_classification_head(
        hidden_states, w1, b1, w2, b2, compute_dtype=jnp.float32)
    out_f32 = jax.block_until_ready(out_f32)
    assert jnp.allclose(out_f32, ref, atol=2e-2, rtol=2e-2), "f32 path mismatch"

    print("KERNEL_OK")
</pallas_src>

<mosaic_0001>
module attributes {stable_mosaic.version = 11 : i64} {
  func.func @_head_kernel(%arg0: i32, %arg1: memref<2x32xbf16, #tpu.memory_space<vmem>>, %arg2: memref<32x32xbf16, #tpu.memory_space<vmem>>, %arg3: memref<1x32xf32, #tpu.memory_space<vmem>>, %arg4: memref<32x4xbf16, #tpu.memory_space<vmem>>, %arg5: memref<1x4xf32, #tpu.memory_space<vmem>>, %arg6: memref<2x4xf32, #tpu.memory_space<vmem>>) attributes {dimension_semantics = [#tpu.dimension_semantics<parallel>], iteration_bounds = array<i64: 1>, scalar_prefetch = 0 : i64, scratch_operands = 0 : i64, tpu.core_type = #tpu.core_type<tc>, window_params = [{transform_indices = @transform_0, window_bounds = array<i64: 2, 32>}, {pipeline_mode = #tpu.pipeline_mode<synchronous>, transform_indices = @transform_1, window_bounds = array<i64: 32, 32>}, {pipeline_mode = #tpu.pipeline_mode<synchronous>, transform_indices = @transform_2, window_bounds = array<i64: 1, 32>}, {pipeline_mode = #tpu.pipeline_mode<synchronous>, transform_indices = @transform_3, window_bounds = array<i64: 32, 4>}, {pipeline_mode = #tpu.pipeline_mode<synchronous>, transform_indices = @transform_4, window_bounds = array<i64: 1, 4>}, {transform_indices = @transform_5, window_bounds = array<i64: 2, 4>}]} {
    %c0 = arith.constant 0 : index
    %c0_0 = arith.constant 0 : index
    %0 = vector.load %arg1[%c0, %c0_0] : memref<2x32xbf16, #tpu.memory_space<vmem>>, vector<2x32xbf16>
    %c0_1 = arith.constant 0 : index
    %c0_2 = arith.constant 0 : index
    %1 = vector.load %arg2[%c0_1, %c0_2] : memref<32x32xbf16, #tpu.memory_space<vmem>>, vector<32x32xbf16>
    %cst = arith.constant dense<0.000000e+00> : vector<2x32xf32>
    %2 = tpu.matmul %0, %1, %cst {dimension_numbers = #tpu.dot_dimension_numbers<[1], [0], [0], [1], [0, 0, 1, 1], [], []>} : vector<2x32xbf16>, vector<32x32xbf16>, vector<2x32xf32> -> vector<2x32xf32>
    %c0_3 = arith.constant 0 : index
    %c0_4 = arith.constant 0 : index
    %3 = vector.load %arg3[%c0_3, %c0_4] : memref<1x32xf32, #tpu.memory_space<vmem>>, vector<1x32xf32>
    %4 = vector.broadcast %3 : vector<1x32xf32> to vector<2x32xf32>
    %5 = arith.addf %2, %4 : vector<2x32xf32>
    %6 = math.tanh %5 : vector<2x32xf32>
    %7 = arith.truncf %6 : vector<2x32xf32> to vector<2x32xbf16>
    %c0_5 = arith.constant 0 : index
    %c0_6 = arith.constant 0 : index
    %8 = vector.load %arg4[%c0_5, %c0_6] : memref<32x4xbf16, #tpu.memory_space<vmem>>, vector<32x4xbf16>
    %cst_7 = arith.constant dense<0.000000e+00> : vector<2x4xf32>
    %9 = tpu.matmul %7, %8, %cst_7 {dimension_numbers = #tpu.dot_dimension_numbers<[1], [0], [0], [1], [0, 0, 1, 1], [], []>} : vector<2x32xbf16>, vector<32x4xbf16>, vector<2x4xf32> -> vector<2x4xf32>
    %c0_8 = arith.constant 0 : index
    %c0_9 = arith.constant 0 : index
    %10 = vector.load %arg5[%c0_8, %c0_9] : memref<1x4xf32, #tpu.memory_space<vmem>>, vector<1x4xf32>
    %11 = vector.broadcast %10 : vector<1x4xf32> to vector<2x4xf32>
    %12 = arith.addf %9, %11 : vector<2x4xf32>
    %c0_10 = arith.constant 0 : index
    %c0_11 = arith.constant 0 : index
    %13 = vector.load %arg6[%c0_10, %c0_11] : memref<2x4xf32, #tpu.memory_space<vmem>>, vector<2x4xf32>
    tpu.vector_store %arg6[%c0_10, %c0_11], %12 {strides = array<i32>} : memref<2x4xf32, #tpu.memory_space<vmem>>, vector<2x4xf32>,
    return
  }
  func.func @transform_0(%arg0: i32) -> (i32, i32) {
    %c0_i32 = arith.constant 0 : i32
    %c0_i32_0 = arith.constant 0 : i32
    return %arg0, %c0_i32 : i32, i32
  }
  func.func @transform_1(%arg0: i32) -> (i32, i32) {
    %c0_i32 = arith.constant 0 : i32
    %c0_i32_0 = arith.constant 0 : i32
    %c0_i32_1 = arith.constant 0 : i32
    return %c0_i32, %c0_i32_0 : i32, i32
  }
  func.func @transform_2(%arg0: i32) -> (i32, i32) {
    %c0_i32 = arith.constant 0 : i32
    %c0_i32_0 = arith.constant 0 : i32
    %c0_i32_1 = arith.constant 0 : i32
    return %c0_i32, %c0_i32_0 : i32, i32
  }
  func.func @transform_3(%arg0: i32) -> (i32, i32) {
    %c0_i32 = arith.constant 0 : i32
    %c0_i32_0 = arith.constant 0 : i32
    %c0_i32_1 = arith.constant 0 : i32
    return %c0_i32, %c0_i32_0 : i32, i32
  }
  func.func @transform_4(%arg0: i32) -> (i32, i32) {
    %c0_i32 = arith.constant 0 : i32
    %c0_i32_0 = arith.constant 0 : i32
    %c0_i32_1 = arith.constant 0 : i32
    return %c0_i32, %c0_i32_0 : i32, i32
  }
  func.func @transform_5(%arg0: i32) -> (i32, i32) {
    %c0_i32 = arith.constant 0 : i32
    %c0_i32_0 = arith.constant 0 : i32
    return %arg0, %c0_i32 : i32, i32
  }
}

</mosaic_0001>

<llo_original>
// kernel: tpu_custom_call.1
$region0: #{tpu_custom_call.1}
  #allocation0 [shape = 'u32[]', space=smem, size = 0x4, offset = 0x4, fixed_abs, tag = 'smem constant byte address 0x4 - core index']
  #allocation1 [shape = 'u32[144,128]{1,0:T(1,128)}', space=vmem, size = 0x12000, scoped, tag = 'internal scratch']
  %s0 = inlined_call_operand.vmem [shape: bf16[2,32], index: 0, kind: input, shape index: {}]
  %s1 = inlined_call_operand.vmem [shape: bf16[32,32], index: 1, kind: input, shape index: {}]
  %s2 = inlined_call_operand.vmem [shape: f32[1,32], index: 2, kind: input, shape index: {}]
  %s3 = inlined_call_operand.vmem [shape: bf16[32,4], index: 3, kind: input, shape index: {}]
  %s4 = inlined_call_operand.vmem [shape: f32[1,4], index: 4, kind: input, shape index: {}]
  %s5 = inlined_call_operand.hbm [shape: f32[2,4], index: 5, kind: output, shape index: {}]
  %s6 = sld [smem:[#allocation0]]
  $region30: #{tpu_custom_call.1} parent=0
    _
  %s8 = ssub.s32 1, %s6
  %s9 = scalar_select 0, %s8, %s6
  $region1: #{tpu_custom_call.1} parent=0
    #allocation2 [shape = 'u8[1024]{0}', space=vmem, size = 0x400, scoped, tag = 'output window, operand 0, single buffered']
    #allocation3 [shape = 's32[1]{0}', space=sflag, size = 0x4, scoped, tag = 'scoped memory for tpu_custom_call.1']
    %10 = vsyncpa [#allocation3], 0
    // Predicated region
    $region2: #{tpu_custom_call.1} parent=1 // pred_check
      _
    $region3: #{tpu_custom_call.1} parent=1 // pred_check_branch
      %12 = sbr.rel (0) target = $region5
    $region4: #{tpu_custom_call.1} parent=1 // pred_region
      _
    $region5: #{tpu_custom_call.1} parent=1 // pred_fallthru
      _
    // Predicated region
    $region6: #{tpu_custom_call.1} parent=1 // pred_check
      _
    $region7: #{tpu_custom_call.1} parent=1 // pred_check_branch
      %14 = sbr.rel (0) target = $region9
    $region8: #{tpu_custom_call.1} parent=1 // pred_region
      _
    $region9: #{tpu_custom_call.1} parent=1 // pred_fallthru
      _
    // Predicated region
    $region10: #{tpu_custom_call.1} parent=1 // pred_check
      _
    $region11: #{tpu_custom_call.1} parent=1 // pred_check_branch
      %16 = sbr.rel (0) target = $region13
    $region12: #{tpu_custom_call.1} parent=1 // pred_region
      _
    $region13: #{tpu_custom_call.1} parent=1 // pred_fallthru
      _
    // Predicated region
    $region14: #{tpu_custom_call.1} parent=1 // pred_check
      _
    $region15: #{tpu_custom_call.1} parent=1 // pred_check_branch
      %18 = sbr.rel (0) target = $region17
    $region16: #{tpu_custom_call.1} parent=1 // pred_region
      _
    $region17: #{tpu_custom_call.1} parent=1 // pred_fallthru
      _
    // Predicated region
    $region18: #{tpu_custom_call.1} parent=1 // pred_check
      _
    $region19: #{tpu_custom_call.1} parent=1 // pred_check_branch
      %20 = sbr.rel (0) target = $region21
    $region20: #{tpu_custom_call.1} parent=1 // pred_region
      _
    $region21: #{tpu_custom_call.1} parent=1 // pred_fallthru
      _
    %v22 = vld [vmem:[%s0] sm:$0x1]
    %v23 = vld [vmem:[%s1] sm:$0xf]
    %v24 = vld [vmem:[%s1 + $0x4] sm:$0xf]
    %v25 = vld [vmem:[%s1 + $0x8] sm:$0xf]
    %v26 = vld [vmem:[%s1 + $0xc] sm:$0xf]
    %v27 = vld [vmem:[%s2] sm:$0x1]
    %v29 = vlaneseq
    %v30 = vshrl.u32 %v29, 7
    %v31 = vsub.s32 0, %v30
    %v32 = vrot.slane %v27, %v31
    %v38 = vunpack.c.l.b16 %v23
    %v39 = vunpack.c.l.b16 %v24
    %v40 = vunpack.c.l.b16 %v25
    %v41 = vunpack.c.l.b16 %v26
    %v42 = vpack.c.b16 %v39, %v38
    %v43 = vpack.c.b16 %v41, %v40
    %vm46 = vcmask 261120
    %v48 = vsel %vm46, %v22, 0
    %50 = vmatprep.subr.bf16.mxu0 0
    %51 = vmatpush1.bf16.msra.mxu0 %v42
    %52 = vmatprep.subr.bf16.mxu0 0
    %53 = vmatpush1.bf16.msra.mxu0 %v43
    %54 = vmatprep.subr.bf16.mxu0 0
    %55 = vmatpush1.bf16.msra.mxu0 0
    %56 = vmatprep.subr.bf16.mxu0 0
    %57 = vmatpush1.bf16.msra.mxu0 0
    %58 = vmatprep.subr.bf16.mxu0 0
    %59 = vmatpush1.bf16.msra.mxu0 0
    %60 = vmatprep.subr.bf16.mxu0 0
    %61 = vmatpush1.bf16.msra.mxu0 0
    %62 = vmatprep.subr.bf16.mxu0 0
    %63 = vmatpush1.bf16.msra.mxu0 0
    %64 = vmatprep.subr.bf16.mxu0 0
    %65 = vmatpush1.bf16.msra.mxu0 0
    %66 = vmatprep.subr.bf16.mxu0 0
    %67 = vmatpush1.bf16.msra.mxu0 0
    %68 = vmatprep.subr.bf16.mxu0 0
    %69 = vmatpush1.bf16.msra.mxu0 0
    %70 = vmatprep.subr.bf16.mxu0 0
    %71 = vmatpush1.bf16.msra.mxu0 0
    %72 = vmatprep.subr.bf16.mxu0 0
    %73 = vmatpush1.bf16.msra.mxu0 0
    %74 = vmatprep.subr.bf16.mxu0 0
    %75 = vmatpush1.bf16.msra.mxu0 0
    %76 = vmatprep.subr.bf16.mxu0 0
    %77 = vmatpush1.bf16.msra.mxu0 0
    %78 = vmatprep.subr.bf16.mxu0 0
    %79 = vmatpush1.bf16.msra.mxu0 0
    %80 = vmatprep.subr.bf16.mxu0 0
    %81 = vmatpush1.bf16.msra.mxu0 0
    %82 = vmatprep.mubr.bf16.mxu0 0
    %83 = vmatmul.mubr.bf16.gmra.mrb[0].mxu0 %v48
    %v84 = vpop.f32.mrb[0].mxu0
    %v85 = vadd.f32 %v32, %v84
    %v86 = vpop.f32.mrb[0].mxu0
    %v87 = vpop.f32.mrb[0].mxu0
    %v88 = vpop.f32.mrb[0].mxu0
    %89 = vdwg.mxu0
    %v90 = vtanh.pop %v85
    %v91 = vpack.c.bf16 %v90, %v90
    %v92 = vld [vmem:[%s3] sm:$0xf]
    %v93 = vld [vmem:[%s3 + $0x4] sm:$0xf]
    %v94 = vld [vmem:[%s3 + $0x8] sm:$0xf]
    %v95 = vld [vmem:[%s3 + $0xc] sm:$0xf]
    %v96 = vld [vmem:[%s4] sm:$0x1]
    %v98 = vlaneseq
    %v99 = vshrl.u32 %v98, 7
    %v100 = vsub.s32 0, %v99
    %v101 = vrot.slane %v96, %v100
    %v107 = vunpack.c.l.b16 %v92
    %v108 = vunpack.c.l.b16 %v93
    %v109 = vunpack.c.l.b16 %v94
    %v110 = vunpack.c.l.b16 %v95
    %v111 = vpack.c.b16 %v108, %v107
    %v112 = vpack.c.b16 %v110, %v109
    %v116 = vsel %vm46, %v91, 0
    %118 = vmatprep.subr.bf16.mxu0 0
    %119 = vmatpush1.bf16.msra.mxu0 %v111
    %120 = vmatprep.subr.bf16.mxu0 0
    %121 = vmatpush1.bf16.msra.mxu0 %v112
    %122 = vmatprep.subr.bf16.mxu0 0
    %123 = vmatpush1.bf16.msra.mxu0 0
    %124 = vmatprep.subr.bf16.mxu0 0
    %125 = vmatpush1.bf16.msra.mxu0 0
    %126 = vmatprep.subr.bf16.mxu0 0
    %127 = vmatpush1.bf16.msra.mxu0 0
    %128 = vmatprep.subr.bf16.mxu0 0
    %129 = vmatpush1.bf16.msra.mxu0 0
    %130 = vmatprep.subr.bf16.mxu0 0
    %131 = vmatpush1.bf16.msra.mxu0 0
    %132 = vmatprep.subr.bf16.mxu0 0
    %133 = vmatpush1.bf16.msra.mxu0 0
    %134 = vmatprep.subr.bf16.mxu0 0
    %135 = vmatpush1.bf16.msra.mxu0 0
    %136 = vmatprep.subr.bf16.mxu0 0
    %137 = vmatpush1.bf16.msra.mxu0 0
    %138 = vmatprep.subr.bf16.mxu0 0
    %139 = vmatpush1.bf16.msra.mxu0 0
    %140 = vmatprep.subr.bf16.mxu0 0
    %141 = vmatpush1.bf16.msra.mxu0 0
    %142 = vmatprep.subr.bf16.mxu0 0
    %143 = vmatpush1.bf16.msra.mxu0 0
    %144 = vmatprep.subr.bf16.mxu0 0
    %145 = vmatpush1.bf16.msra.mxu0 0
    %146 = vmatprep.subr.bf16.mxu0 0
    %147 = vmatpush1.bf16.msra.mxu0 0
    %148 = vmatprep.subr.bf16.mxu0 0
    %149 = vmatpush1.bf16.msra.mxu0 0
    %150 = vmatprep.mubr.bf16.mxu0 0
    %151 = vmatmul.mubr.bf16.gmra.mrb[0].mxu0 %v116
    %v152 = vpop.f32.mrb[0].mxu0
    %v153 = vadd.f32 %v101, %v152
    %v154 = vpop.f32.mrb[0].mxu0
    %v155 = vpop.f32.mrb[0].mxu0
    %v156 = vpop.f32.mrb[0].mxu0
    %157 = vdwg.mxu0
    %vm158 = vcmask 25600
    %159 = vst.msk [vmem:[#allocation2] sm:$0x3] %vm158, %v153
    // Predicated region
    $region22: #{tpu_custom_call.1} parent=1 // pred_check
      _
    $region23: #{tpu_custom_call.1} parent=1 // pred_check_branch
      %161 = sbr.rel (0) target = $region25
    $region24: #{tpu_custom_call.1} parent=1 // pred_region
      %s163 = ssub.s32 32, 32
      %164 = vsyncadd [#allocation3], %s163
      %s166 = sshll.u32 [#allocation2], 4
      %s167 = int_to_ptr.vmem [resolvable:$true] %s166
      %169 = dma.vmem_to_hbm [thread:$0]  %s167, 32, %s5, [#allocation3]
    $region25: #{tpu_custom_call.1} parent=1 // pred_fallthru
      _
    // Predicated region
    $region26: #{tpu_custom_call.1} parent=1 // pred_check
      _
    $region27: #{tpu_custom_call.1} parent=1 // pred_check_branch
      %171 = sbr.rel (0) target = $region29
    $region28: #{tpu_custom_call.1} parent=1 // pred_region
      %172 = dma.done [#allocation3], 32
    $region29: #{tpu_custom_call.1} parent=1 // pred_fallthru
      _
    %173 = vsyncpa [#allocation3], 1

</llo_original>
